<compile_context>
chip_gen: v7x
topology: tpu7x:2x2x1
jax: 0.10.0
libtpu: 0.0.40
codegen_flags: <defaults>
</compile_context>

<pallas_src>
from functools import partial

import numpy as np
import jax
import jax.numpy as jnp
from jax import lax
from jax.experimental import pallas as pl
from jax.experimental.pallas import tpu as pltpu


def _round_up(x, m):
    return (x + m - 1) // m * m


# ----------------------------- glue (plain Python) ----------------------------

def jaccard(s1, s2):
    assert len(s1) + len(s2) > 0
    s1, s2 = set(s1), set(s2)
    return len(s1 & s2) / len(s1 | s2)


# -------------------------------- fused kernel ---------------------------------

def reward_kernel(emb_ref, mask_ref, jac_ref, rd_ref, out_ref, pooled_ref, *,
                  tile_rows, n_gen, n_ans, w_cos, w_jac):
    # emb_ref   : [tb, S, H]  encoder activations (f32 or bf16), current batch tile
    # mask_ref  : [tb, S]     f32 attention mask
    # jac_ref   : [G, E]      f32 jaccard scores (exact, no padding)
    # rd_ref    : [1, E]      f32 reward direction (+1 good / -1 bad)
    # out_ref   : [G, 128]    f32 reward broadcast across lanes (lane-dense store)
    # pooled_ref: [Bp, H]     f32 persistent VMEM scratch of unit-norm pooled rows
    i = pl.program_id(0)

    # ---- masked mean pooling for this batch tile (MXU, f32 accumulation) -----
    emb = emb_ref[...]                                           # [tb, S, H]
    # 0/1 masks are exact in any float dtype; a soft/fractional mask would be
    # quantized here only if the activations are bf16.
    maskv = mask_ref[...].astype(emb.dtype)[:, None, :]          # [tb, 1, S]
    summed = jnp.einsum("bqs,bsh->bqh", maskv, emb,
                        preferred_element_type=jnp.float32)[:, 0, :]   # [tb, H] f32

    # Mean division (sum(mask) clamp + reciprocal) dropped: the L2 normalization
    # below cancels any positive per-row scalar, so sum-pooling == mean-pooling
    # as far as the cosine similarity is concerned.
    sumsq = jnp.sum(summed * summed, axis=1, keepdims=True)
    unit = summed * lax.rsqrt(jnp.maximum(sumsq, 1e-16))         # EUP rsqrt (eps 1e-8)

    row0 = i * tile_rows
    if tile_rows % 8 == 0:                                       # static (trace-time) hint
        row0 = pl.multiple_of(row0, 8)
    pooled_ref[pl.ds(row0, tile_rows), :] = unit

    # ---- fused tail: cosine + jaccard mix + signed max (last grid step) ------
    @pl.when(i == pl.num_programs(0) - 1)
    def _():
        gen_u = pooled_ref[:n_gen, :]                            # [G, H] unit rows
        ans_u = pooled_ref[pl.ds(n_gen, n_ans), :]               # [E, H] unit rows
        cos = lax.dot_general(gen_u, ans_u, (((1,), (1,)), ((), ())),
                              preferred_element_type=jnp.float32)      # [G, E]
        cos = jnp.maximum(cos, 0.0)                              # coses[coses < 0] = 0
        sim = w_cos * cos + w_jac * jac_ref[...]                 # [G, E]
        val = jnp.max(sim, axis=-1, keepdims=True)               # [G, 1]
        iota_e = lax.broadcasted_iota(jnp.int32, sim.shape, 1)
        # first-argmax tie-break, matching torch.max(dim=-1)
        idx = jnp.min(jnp.where(sim >= val, iota_e, n_ans), axis=-1, keepdims=True)
        rd = jnp.broadcast_to(rd_ref[...], sim.shape)
        chosen = jnp.sum(jnp.where(iota_e == idx, rd, 0.0),
                         axis=-1, keepdims=True)                 # [G, 1]
        out_ref[...] = jnp.broadcast_to(val * chosen, out_ref.shape)


# ------------------------------ tiling heuristics ------------------------------

def _vmem_plan():
    """Returns (tile budget bytes, vmem_limit_bytes) sized from the chip's VMEM."""
    try:
        cap = int(pltpu.get_tpu_info().vmem_capacity_bytes)
    except Exception:
        cap = 64 << 20                     # conservative fallback: v7x per-core VMEM
    # 48 MiB budget on v7x (64 MiB physical), 96 MiB on v5e/v6e (128 MiB physical);
    # headroom left for compiler-internal scratch and the small epilogue temporaries.
    budget = max(24 << 20, min(cap - (16 << 20), 96 << 20))
    limit = min(cap, budget + (8 << 20))
    return budget, limit


def _choose_tile_rows(n_rows, seq, hidden, emb_itemsize, budget_bytes):
    """Largest multiple-of-8 batch tile whose double-buffered stream fits VMEM."""
    lanes = _round_up(hidden, 128)
    pooled_bytes = _round_up(n_rows, 8) * lanes * 4              # persistent scratch
    stream_budget = max(budget_bytes - pooled_bytes - (2 << 20), 4 << 20)
    per_row = 2 * (_round_up(seq, 8) * lanes * emb_itemsize      # emb, double-buffered
                   + _round_up(seq, 128) * 4)                    # mask, double-buffered
    tb = (stream_budget // per_row) // 8 * 8
    return int(max(8, min(tb, 512, _round_up(n_rows, 8))))


# ---------------------------------- wrapper ------------------------------------

def reward_by_similarity_pallas(token_embeddings, attention_mask, jaccards,
                                reward_direction, n_gen,
                                weight_for_cos_and_jaccard=(0.5, 0.5)):
    # token_embeddings: [B, S, H] encoder activations (model_output[0]).  Pass them at
    # the encoder's dtype (bf16 halves the dominant HBM traffic, f32 is exact) -- the
    # wrapper does NOT cast, pad, or concatenate this tensor.
    B, S, H = token_embeddings.shape
    G, E = jaccards.shape
    assert G == n_gen and B == n_gen + E and G > 0 and E > 0

    emb = jnp.asarray(token_embeddings)
    mask = jnp.asarray(attention_mask).astype(jnp.float32)
    jac = jnp.asarray(jaccards).astype(jnp.float32)
    rd = jnp.asarray(reward_direction).astype(jnp.float32).reshape(1, E)

    budget, vmem_limit = _vmem_plan()
    tb = _choose_tile_rows(B, S, H, emb.dtype.itemsize, budget)
    if B <= tb:
        tb = B                      # single exact tile: every block == full array dims
    n_tiles = pl.cdiv(B, tb)        # boundary block (if any) is masked by Pallas
    scratch_rows = n_tiles * tb

    kernel = partial(reward_kernel, tile_rows=tb, n_gen=G, n_ans=E,
                     w_cos=float(weight_for_cos_and_jaccard[0]),
                     w_jac=float(weight_for_cos_and_jaccard[1]))

    out = pl.pallas_call(
        kernel,
        out_shape=jax.ShapeDtypeStruct((G, 128), jnp.float32),
        grid=(n_tiles,),
        in_specs=[
            pl.BlockSpec((tb, S, H), lambda i: (i, 0, 0)),   # streamed activations
            pl.BlockSpec((tb, S), lambda i: (i, 0)),         # streamed mask
            pl.BlockSpec((G, E), lambda i: (0, 0)),          # tiny, resident
            pl.BlockSpec((1, E), lambda i: (0, 0)),          # tiny, resident
        ],
        out_specs=pl.BlockSpec((G, 128), lambda i: (0, 0)),
        scratch_shapes=[pltpu.VMEM((scratch_rows, H), jnp.float32)],
        compiler_params=pltpu.CompilerParams(
            # Pooled scratch / output are carried across the batch axis (fused tail),
            # so this axis must be "arbitrary".  For very large B on v7x a split
            # 2-kernel variant would recover megacore sharding of the pooling stream.
            dimension_semantics=("arbitrary",),
            vmem_limit_bytes=int(vmem_limit),
        ),
    )(emb, mask, jac, rd)
    return out[:, 0]


# --------------------------------- reference ------------------------------------

def reward_reference(emb, mask, jac, rd, n_gen, w):
    emb = np.asarray(emb, dtype=np.float64)
    mask = np.asarray(mask, dtype=np.float64)
    jac = np.asarray(jac, dtype=np.float64)
    rd = np.asarray(rd, dtype=np.float64)
    sent = (emb * mask[:, :, None]).sum(1) / np.clip(
        mask.sum(1, keepdims=True), 1e-9, None)
    gen, ans = sent[:n_gen], sent[n_gen:]
    gn = np.maximum(np.linalg.norm(gen, axis=1, keepdims=True), 1e-8)
    an = np.maximum(np.linalg.norm(ans, axis=1, keepdims=True), 1e-8)
    cos = np.maximum((gen / gn) @ (ans / an).T, 0.0)
    sim = w[0] * cos + w[1] * jac
    idx = sim.argmax(-1)
    val = sim.max(-1)
    return val * rd[idx]


# ------------------------------------ main ---------------------------------------

if __name__ == "__main__":
    # small shapes: 2 gen texts, 2 good answers, 2 bad answers, seq=8, hidden=32
    n_gen, n_good, n_bad = 2, 2, 2
    n_examples = n_good + n_bad
    B, S, H = n_gen + n_examples, 8, 32

    key = jax.random.PRNGKey(0)
    # TODO(synk): the BERT encoder / tokenizer are not kernel material; synthetic
    # deterministic token embeddings stand in for model_output[0].
    token_embeddings = jax.random.normal(key, (B, S, H), dtype=jnp.float32)

    lens = np.array([8, 5, 6, 7, 4, 8])
    attention_mask = (np.arange(S)[None, :] < lens[:, None]).astype(np.float32)

    # synthetic deterministic token-id lists (tokenizer output stand-in);
    # jaccard uses Python set ops -> computed as host glue, passed as a dense matrix.
    ids = [
        [1, 2, 3, 4, 5],    # gen 0
        [2, 3, 6, 7],       # gen 1
        [1, 2, 3, 9],       # good 0
        [4, 5, 6],          # good 1
        [7, 8, 9, 10],      # bad 0
        [2, 6, 11],         # bad 1
    ]
    jaccards = np.array(
        [[jaccard(ids[i], ids[n_gen + j]) for j in range(n_examples)]
         for i in range(n_gen)], dtype=np.float32)

    reward_direction = np.ones(n_examples, dtype=np.float32)
    reward_direction[n_good:] = -1.0
    weights = (0.5, 0.5)

    reward = reward_by_similarity_pallas(
        token_embeddings, jnp.asarray(attention_mask), jnp.asarray(jaccards),
        jnp.asarray(reward_direction), n_gen, weights)
    reward = jax.block_until_ready(reward)

    ref = reward_reference(np.asarray(token_embeddings), attention_mask,
                           jaccards, reward_direction, n_gen, weights)

    np.testing.assert_allclose(np.asarray(reward), ref, rtol=1e-4, atol=1e-4)
    print("KERNEL_OK")
</pallas_src>

<mosaic_0001>
module attributes {stable_mosaic.version = 11 : i64} {
  func.func @reward_kernel(%arg0: i32, %arg1: memref<6x8x32xf32, #tpu.memory_space<vmem>>, %arg2: memref<6x8xf32, #tpu.memory_space<vmem>>, %arg3: memref<2x4xf32, #tpu.memory_space<vmem>>, %arg4: memref<1x4xf32, #tpu.memory_space<vmem>>, %arg5: memref<2x128xf32, #tpu.memory_space<vmem>>, %arg6: memref<6x32xf32, #tpu.memory_space<vmem>>) attributes {dimension_semantics = [#tpu.dimension_semantics<arbitrary>], iteration_bounds = array<i64: 1>, scalar_prefetch = 0 : i64, scratch_operands = 1 : i64, tpu.core_type = #tpu.core_type<tc>, window_params = [{transform_indices = @transform_0, window_bounds = array<i64: 6, 8, 32>}, {transform_indices = @transform_1, window_bounds = array<i64: 6, 8>}, {pipeline_mode = #tpu.pipeline_mode<synchronous>, transform_indices = @transform_2, window_bounds = array<i64: 2, 4>}, {pipeline_mode = #tpu.pipeline_mode<synchronous>, transform_indices = @transform_3, window_bounds = array<i64: 1, 4>}, {pipeline_mode = #tpu.pipeline_mode<synchronous>, transform_indices = @transform_4, window_bounds = array<i64: 2, 128>}]} {
    %c0 = arith.constant 0 : index
    %c0_0 = arith.constant 0 : index
    %c0_1 = arith.constant 0 : index
    %0 = vector.load %arg1[%c0, %c0_0, %c0_1] : memref<6x8x32xf32, #tpu.memory_space<vmem>>, vector<6x8x32xf32>
    %c0_2 = arith.constant 0 : index
    %c0_3 = arith.constant 0 : index
    %1 = vector.load %arg2[%c0_2, %c0_3] : memref<6x8xf32, #tpu.memory_space<vmem>>, vector<6x8xf32>
    %2 = vector.shape_cast %1 : vector<6x8xf32> to vector<6x1x8xf32>
    "tpu.trace_start"() <{level = 10 : i32, message = "bqs,bsh->bqh"}> : () -> ()
    %cst = arith.constant dense<0.000000e+00> : vector<6x1x32xf32>
    %3 = tpu.matmul %2, %0, %cst {dimension_numbers = #tpu.dot_dimension_numbers<[2], [1], [1], [2], [0, 0, 0, 1, 1, 2], [0], [0]>} : vector<6x1x8xf32>, vector<6x8x32xf32>, vector<6x1x32xf32> -> vector<6x1x32xf32>
    "tpu.trace_stop"() : () -> ()
    %4 = vector.shape_cast %3 : vector<6x1x32xf32> to vector<6x32xf32>
    %5 = arith.mulf %4, %4 : vector<6x32xf32>
    %cst_4 = arith.constant dense<0.000000e+00> : vector<6xf32>
    %6 = vector.multi_reduction <add>, %5, %cst_4 [1] : vector<6x32xf32> to vector<6xf32>
    %7 = vector.shape_cast %6 : vector<6xf32> to vector<6x1xf32>
    %cst_5 = arith.constant 1.000000e-16 : f32
    %8 = vector.broadcast %cst_5 : f32 to vector<6x1xf32>
    %9 = arith.maximumf %7, %8 : vector<6x1xf32>
    %10 = math.rsqrt %9 : vector<6x1xf32>
    %11 = vector.broadcast %10 : vector<6x1xf32> to vector<6x32xf32>
    %12 = arith.mulf %4, %11 : vector<6x32xf32>
    %c6_i32 = arith.constant 6 : i32
    %13 = arith.muli %arg0, %c6_i32 : i32
    %14 = arith.index_cast %13 : i32 to index
    %c0_6 = arith.constant 0 : index
    %15 = vector.load %arg6[%14, %c0_6] : memref<6x32xf32, #tpu.memory_space<vmem>>, vector<6x32xf32>
    tpu.vector_store %arg6[%14, %c0_6], %12 {strides = array<i32>} : memref<6x32xf32, #tpu.memory_space<vmem>>, vector<6x32xf32>,
    %c0_i32 = arith.constant 0 : i32
    %16 = arith.cmpi eq, %arg0, %c0_i32 : i32
    %17 = arith.extui %16 : i1 to i32
    %c0_i32_7 = arith.constant 0 : i32
    %18 = arith.cmpi ne, %17, %c0_i32_7 : i32
    scf.if %18 {
      %c0_8 = arith.constant 0 : index
      %c0_9 = arith.constant 0 : index
      %19 = vector.load %arg6[%c0_8, %c0_9] : memref<6x32xf32, #tpu.memory_space<vmem>>, vector<2x32xf32>
      %c2 = arith.constant 2 : index
      %c0_10 = arith.constant 0 : index
      %20 = vector.load %arg6[%c2, %c0_10] : memref<6x32xf32, #tpu.memory_space<vmem>>, vector<4x32xf32>
      %cst_11 = arith.constant dense<0.000000e+00> : vector<2x4xf32>
      %21 = tpu.matmul %19, %20, %cst_11 {dimension_numbers = #tpu.dot_dimension_numbers<[1], [1], [0], [0], [0, 0, 1, 0], [], []>} : vector<2x32xf32>, vector<4x32xf32>, vector<2x4xf32> -> vector<2x4xf32>
      %cst_12 = arith.constant 0.000000e+00 : f32
      %22 = vector.broadcast %cst_12 : f32 to vector<2x4xf32>
      %23 = arith.maximumf %21, %22 : vector<2x4xf32>
      %cst_13 = arith.constant 5.000000e-01 : f32
      %24 = vector.broadcast %cst_13 : f32 to vector<2x4xf32>
      %25 = arith.mulf %24, %23 : vector<2x4xf32>
      %c0_14 = arith.constant 0 : index
      %c0_15 = arith.constant 0 : index
      %26 = vector.load %arg3[%c0_14, %c0_15] : memref<2x4xf32, #tpu.memory_space<vmem>>, vector<2x4xf32>
      %cst_16 = arith.constant 5.000000e-01 : f32
      %27 = vector.broadcast %cst_16 : f32 to vector<2x4xf32>
      %28 = arith.mulf %27, %26 : vector<2x4xf32>
      %29 = arith.addf %25, %28 : vector<2x4xf32>
      %cst_17 = arith.constant dense<0xFF800000> : vector<2xf32>
      %30 = vector.multi_reduction <maximumf>, %29, %cst_17 [1] : vector<2x4xf32> to vector<2xf32>
      %31 = vector.shape_cast %30 : vector<2xf32> to vector<2x1xf32>
      %32 = tpu.iota {dimensions = array<i32: 1>} : vector<2x4xi32>
      %33 = vector.broadcast %31 : vector<2x1xf32> to vector<2x4xf32>
      %34 = arith.cmpf oge, %29, %33 : vector<2x4xf32>
      %c4_i32 = arith.constant 4 : i32
      %35 = vector.broadcast %c4_i32 : i32 to vector<2x4xi32>
      %36 = arith.select %34, %32, %35 : vector<2x4xi1>, vector<2x4xi32>
      %cst_18 = arith.constant dense<2147483647> : vector<2xi32>
      %37 = vector.multi_reduction <minsi>, %36, %cst_18 [1] : vector<2x4xi32> to vector<2xi32>
      %38 = vector.shape_cast %37 : vector<2xi32> to vector<2x1xi32>
      %c0_19 = arith.constant 0 : index
      %c0_20 = arith.constant 0 : index
      %39 = vector.load %arg4[%c0_19, %c0_20] : memref<1x4xf32, #tpu.memory_space<vmem>>, vector<1x4xf32>
      %40 = vector.shape_cast %39 : vector<1x4xf32> to vector<1x4xf32>
      %41 = vector.broadcast %40 : vector<1x4xf32> to vector<2x4xf32>
      %42 = vector.broadcast %38 : vector<2x1xi32> to vector<2x4xi32>
      %43 = arith.cmpi eq, %32, %42 : vector<2x4xi32>
      %cst_21 = arith.constant 0.000000e+00 : f32
      %44 = vector.broadcast %cst_21 : f32 to vector<2x4xf32>
      %45 = arith.select %43, %41, %44 : vector<2x4xi1>, vector<2x4xf32>
      %cst_22 = arith.constant dense<0.000000e+00> : vector<2xf32>
      %46 = vector.multi_reduction <add>, %45, %cst_22 [1] : vector<2x4xf32> to vector<2xf32>
      %47 = vector.shape_cast %46 : vector<2xf32> to vector<2x1xf32>
      %48 = arith.mulf %31, %47 : vector<2x1xf32>
      %49 = vector.shape_cast %48 : vector<2x1xf32> to vector<2x1xf32>
      %50 = vector.broadcast %49 : vector<2x1xf32> to vector<2x128xf32>
      %c0_23 = arith.constant 0 : index
      %c0_24 = arith.constant 0 : index
      %51 = vector.load %arg5[%c0_23, %c0_24] : memref<2x128xf32, #tpu.memory_space<vmem>>, vector<2x128xf32>
      tpu.vector_store %arg5[%c0_23, %c0_24], %50 {strides = array<i32>} : memref<2x128xf32, #tpu.memory_space<vmem>>, vector<2x128xf32>,
    } else {
    }
    return
  }
  func.func @transform_0(%arg0: i32) -> (i32, i32, i32) {
    %c0_i32 = arith.constant 0 : i32
    %c0_i32_0 = arith.constant 0 : i32
    %c0_i32_1 = arith.constant 0 : i32
    return %arg0, %c0_i32, %c0_i32_0 : i32, i32, i32
  }
  func.func @transform_1(%arg0: i32) -> (i32, i32) {
    %c0_i32 = arith.constant 0 : i32
    %c0_i32_0 = arith.constant 0 : i32
    return %arg0, %c0_i32 : i32, i32
  }
  func.func @transform_2(%arg0: i32) -> (i32, i32) {
    %c0_i32 = arith.constant 0 : i32
    %c0_i32_0 = arith.constant 0 : i32
    %c0_i32_1 = arith.constant 0 : i32
    return %c0_i32, %c0_i32_0 : i32, i32
  }
  func.func @transform_3(%arg0: i32) -> (i32, i32) {
    %c0_i32 = arith.constant 0 : i32
    %c0_i32_0 = arith.constant 0 : i32
    %c0_i32_1 = arith.constant 0 : i32
    return %c0_i32, %c0_i32_0 : i32, i32
  }
  func.func @transform_4(%arg0: i32) -> (i32, i32) {
    %c0_i32 = arith.constant 0 : i32
    %c0_i32_0 = arith.constant 0 : i32
    %c0_i32_1 = arith.constant 0 : i32
    return %c0_i32, %c0_i32_0 : i32, i32
  }
}

</mosaic_0001>

<llo_original>
// kernel: tpu_custom_call.1
$region0: #{tpu_custom_call.1}
  #allocation0 [shape = 'u32[]', space=smem, size = 0x4, offset = 0x4, fixed_abs, tag = 'smem constant byte address 0x4 - core index']
  #allocation1 [shape = 'u32[144,128]{1,0:T(1,128)}', space=vmem, size = 0x12000, scoped, tag = 'internal scratch']
  #allocation2 [shape = 'f32[6,32]{1,0:T(8,128)}', space=vmem, size = 0x1000, scoped, tag = 'scratch operand']
  %s0 = inlined_call_operand.hbm [shape: f32[6,8,32], index: 0, kind: input, shape index: {}]
  %s1 = inlined_call_operand.hbm [shape: f32[6,8], index: 1, kind: input, shape index: {}]
  %s2 = inlined_call_operand.vmem [shape: f32[2,4], index: 2, kind: input, shape index: {}]
  %s3 = inlined_call_operand.vmem [shape: f32[1,4], index: 3, kind: input, shape index: {}]
  %s4 = inlined_call_operand.hbm [shape: f32[2,128], index: 4, kind: output, shape index: {}]
  %s5 = sld [smem:[#allocation0]]
  $region38: #{tpu_custom_call.1} parent=0
    _
  %s7 = ssub.s32 1, %s5
  %s8 = scalar_select 0, %s7, %s5
  $region1: #{tpu_custom_call.1} parent=0
    #allocation3 [shape = 'u8[24576]{0}', space=vmem, size = 0x6000, scoped, tag = 'input window, operand 0, single buffered']
    #allocation4 [shape = 's32[1]{0}', space=sflag, size = 0x4, scoped, tag = 'scoped memory for tpu_custom_call.1']
    #allocation5 [shape = 's32[1]{0}', space=sflag, size = 0x4, scoped, tag = 'scoped memory for tpu_custom_call.1']
    #allocation6 [shape = 'u8[4096]{0}', space=vmem, size = 0x1000, scoped, tag = 'input window, operand 1, single buffered']
    #allocation7 [shape = 's32[1]{0}', space=sflag, size = 0x4, scoped, tag = 'scoped memory for tpu_custom_call.1']
    #allocation8 [shape = 'u8[1024]{0}', space=vmem, size = 0x400, scoped, tag = 'output window, operand 0, single buffered']
    %9 = vsyncpa [#allocation4], 0
    %10 = vsyncpa [#allocation7], 0
    %11 = vsyncpa [#allocation5], 0
    // Predicated region
    $region2: #{tpu_custom_call.1} parent=1 // pred_check
      _
    $region3: #{tpu_custom_call.1} parent=1 // pred_check_branch
      %13 = sbr.rel (0) target = $region5
    $region4: #{tpu_custom_call.1} parent=1 // pred_region
      %s15 = ssub.s32 768, 768
      %16 = vsyncadd [#allocation4], %s15
      %s17 = sshll.u32 [#allocation3], 4
      %s18 = int_to_ptr.vmem [resolvable:$true] %s17
      %23 = dma.hbm_to_vmem [thread:$0]  %s0, 768, %s18, [#allocation4], 128, 128, 8
    $region5: #{tpu_custom_call.1} parent=1 // pred_fallthru
      _
    // Predicated region
    $region6: #{tpu_custom_call.1} parent=1 // pred_check
      _
    $region7: #{tpu_custom_call.1} parent=1 // pred_check_branch
      %25 = sbr.rel (0) target = $region9
    $region8: #{tpu_custom_call.1} parent=1 // pred_region
      %s27 = ssub.s32 128, 128
      %28 = vsyncadd [#allocation7], %s27
      %s30 = sshll.u32 [#allocation6], 4
      %s31 = int_to_ptr.vmem [resolvable:$true] %s30
      %33 = dma.hbm_to_vmem [thread:$0]  %s1, 128, %s31, [#allocation7]
    $region9: #{tpu_custom_call.1} parent=1 // pred_fallthru
      _
    // Predicated region
    $region10: #{tpu_custom_call.1} parent=1 // pred_check
      _
    $region11: #{tpu_custom_call.1} parent=1 // pred_check_branch
      %35 = sbr.rel (0) target = $region13
    $region12: #{tpu_custom_call.1} parent=1 // pred_region
      _
    $region13: #{tpu_custom_call.1} parent=1 // pred_fallthru
      _
    // Predicated region
    $region14: #{tpu_custom_call.1} parent=1 // pred_check
      _
    $region15: #{tpu_custom_call.1} parent=1 // pred_check_branch
      %37 = sbr.rel (0) target = $region17
    $region16: #{tpu_custom_call.1} parent=1 // pred_region
      _
    $region17: #{tpu_custom_call.1} parent=1 // pred_fallthru
      _
    // Predicated region
    $region18: #{tpu_custom_call.1} parent=1 // pred_check
      _
    $region19: #{tpu_custom_call.1} parent=1 // pred_check_branch
      %39 = sbr.rel (0) target = $region21
    $region20: #{tpu_custom_call.1} parent=1 // pred_region
      %40 = dma.done [#allocation4], 768
    $region21: #{tpu_custom_call.1} parent=1 // pred_fallthru
      _
    // Predicated region
    $region22: #{tpu_custom_call.1} parent=1 // pred_check
      _
    $region23: #{tpu_custom_call.1} parent=1 // pred_check_branch
      %42 = sbr.rel (0) target = $region25
    $region24: #{tpu_custom_call.1} parent=1 // pred_region
      %43 = dma.done [#allocation7], 128
    $region25: #{tpu_custom_call.1} parent=1 // pred_fallthru
      _
    %v44 = vld [vmem:[#allocation3] sm:$0xff]
    %v45 = vld [vmem:[#allocation3 + $0x8] sm:$0xff]
    %v46 = vld [vmem:[#allocation3 + $0x10] sm:$0xff]
    %v47 = vld [vmem:[#allocation3 + $0x18] sm:$0xff]
    %v48 = vld [vmem:[#allocation3 + $0x20] sm:$0xff]
    %v49 = vld [vmem:[#allocation3 + $0x28] sm:$0xff]
    %v50 = vld [vmem:[#allocation6] sm:$0x3f]
    %v52 = vcombine.high %v50, %v50
    %v54 = vunpack.c.l.s4 1966171168
    %v55 = vunpack.c.0.s8 %v54
    %v56 = vlaneseq
    %v57 = vshrl.u32 %v56, 7
    %v58 = vsub.s32 %v55, %v57
    %v59 = vrot.slane %v50, %v58
    %v61 = vunpack.c.l.s4 1966171168
    %v62 = vunpack.c.0.s8 %v61
    %v63 = vlaneseq
    %v64 = vshrl.u32 %v63, 7
    %v65 = vsub.s32 %v62, %v64
    %v66 = vrot.slane %v52, %v65
    %v67 = vcombine.high %v59, %v59
    %v68 = vcombine.high %v66, %v66
    %v70 = vunpack.c.l.s4 1966171168
    %v71 = vunpack.c.0.s8 %v70
    %v72 = vlaneseq
    %v73 = vshrl.u32 %v72, 7
    %v74 = vsub.s32 %v71, %v73
    %v75 = vrot.slane %v59, %v74
    %v77 = vunpack.c.l.s4 1966171168
    %v78 = vunpack.c.0.s8 %v77
    %v79 = vlaneseq
    %v80 = vshrl.u32 %v79, 7
    %v81 = vsub.s32 %v78, %v80
    %v82 = vrot.slane %v66, %v81
    %v84 = vunpack.c.l.s4 1966171168
    %v85 = vunpack.c.0.s8 %v84
    %v86 = vlaneseq
    %v87 = vshrl.u32 %v86, 7
    %v88 = vsub.s32 %v85, %v87
    %v89 = vrot.slane %v67, %v88
    %v91 = vunpack.c.l.s4 1966171168
    %v92 = vunpack.c.0.s8 %v91
    %v93 = vlaneseq
    %v94 = vshrl.u32 %v93, 7
    %v95 = vsub.s32 %v92, %v94
    %v96 = vrot.slane %v68, %v95
    %v97 = vcombine.high %v75, %v75
    %v98 = vcombine.high %v89, %v89
    %vm99 = vcmask 64512
    %v100 = vsel %vm99, %v75, 0
    %102 = vmatprep.subr.mxu0 0.0
    %103 = vmatpush1.msra.mxu0 %v44
    %104 = vmatprep.subr.mxu0 0.0
    %105 = vmatpush1.msra.mxu0 0.0
    %106 = vmatprep.subr.mxu0 0.0
    %107 = vmatpush1.msra.mxu0 0.0
    %108 = vmatprep.subr.mxu0 0.0
    %109 = vmatpush1.msra.mxu0 0.0
    %110 = vmatprep.subr.mxu0 0.0
    %111 = vmatpush1.msra.mxu0 0.0
    %112 = vmatprep.subr.mxu0 0.0
    %113 = vmatpush1.msra.mxu0 0.0
    %114 = vmatprep.subr.mxu0 0.0
    %115 = vmatpush1.msra.mxu0 0.0
    %116 = vmatprep.subr.mxu0 0.0
    %117 = vmatpush1.msra.mxu0 0.0
    %118 = vmatprep.subr.mxu0 0.0
    %119 = vmatpush1.msra.mxu0 0.0
    %120 = vmatprep.subr.mxu0 0.0
    %121 = vmatpush1.msra.mxu0 0.0
    %122 = vmatprep.subr.mxu0 0.0
    %123 = vmatpush1.msra.mxu0 0.0
    %124 = vmatprep.subr.mxu0 0.0
    %125 = vmatpush1.msra.mxu0 0.0
    %126 = vmatprep.subr.mxu0 0.0
    %127 = vmatpush1.msra.mxu0 0.0
    %128 = vmatprep.subr.mxu0 0.0
    %129 = vmatpush1.msra.mxu0 0.0
    %130 = vmatprep.subr.mxu0 0.0
    %131 = vmatpush1.msra.mxu0 0.0
    %132 = vmatprep.subr.mxu0 0.0
    %133 = vmatpush1.msra.mxu0 0.0
    %134 = vmatprep.subr.mxu0 0.0
    %135 = vmatpush1.msra.mxu0 0.0
    %136 = vmatprep.subr.mxu0 0.0
    %137 = vmatpush1.msra.mxu0 0.0
    %138 = vmatprep.subr.mxu0 0.0
    %139 = vmatpush1.msra.mxu0 0.0
    %140 = vmatprep.subr.mxu0 0.0
    %141 = vmatpush1.msra.mxu0 0.0
    %142 = vmatprep.subr.mxu0 0.0
    %143 = vmatpush1.msra.mxu0 0.0
    %144 = vmatprep.subr.mxu0 0.0
    %145 = vmatpush1.msra.mxu0 0.0
    %146 = vmatprep.subr.mxu0 0.0
    %147 = vmatpush1.msra.mxu0 0.0
    %148 = vmatprep.subr.mxu0 0.0
    %149 = vmatpush1.msra.mxu0 0.0
    %150 = vmatprep.subr.mxu0 0.0
    %151 = vmatpush1.msra.mxu0 0.0
    %152 = vmatprep.subr.mxu0 0.0
    %153 = vmatpush1.msra.mxu0 0.0
    %154 = vmatprep.subr.mxu0 0.0
    %155 = vmatpush1.msra.mxu0 0.0
    %156 = vmatprep.subr.mxu0 0.0
    %157 = vmatpush1.msra.mxu0 0.0
    %158 = vmatprep.subr.mxu0 0.0
    %159 = vmatpush1.msra.mxu0 0.0
    %160 = vmatprep.subr.mxu0 0.0
    %161 = vmatpush1.msra.mxu0 0.0
    %162 = vmatprep.subr.mxu0 0.0
    %163 = vmatpush1.msra.mxu0 0.0
    %164 = vmatprep.subr.mxu0 0.0
    %165 = vmatpush1.msra.mxu0 0.0
    %166 = vmatprep.mubr.f32.mxu0 0.0
    %167 = vmatmul.mubr.f32.gmra.mrb[0].mxu0 %v100
    %v168 = vpop.f32.mrb[0].mxu0
    %v169 = vadd.f32 0.0, %v168
    %v170 = vpop.f32.mrb[0].mxu0
    %171 = vdwg.mxu0
    %v172 = vsel %vm99, %v89, 0
    %174 = vmatprep.subr.mxu0 0.0
    %175 = vmatpush1.msra.mxu0 %v45
    %176 = vmatprep.subr.mxu0 0.0
    %177 = vmatpush1.msra.mxu0 0.0
    %178 = vmatprep.subr.mxu0 0.0
    %179 = vmatpush1.msra.mxu0 0.0
    %180 = vmatprep.subr.mxu0 0.0
    %181 = vmatpush1.msra.mxu0 0.0
    %182 = vmatprep.subr.mxu0 0.0
    %183 = vmatpush1.msra.mxu0 0.0
    %184 = vmatprep.subr.mxu0 0.0
    %185 = vmatpush1.msra.mxu0 0.0
    %186 = vmatprep.subr.mxu0 0.0
    %187 = vmatpush1.msra.mxu0 0.0
    %188 = vmatprep.subr.mxu0 0.0
    %189 = vmatpush1.msra.mxu0 0.0
    %190 = vmatprep.subr.mxu0 0.0
    %191 = vmatpush1.msra.mxu0 0.0
    %192 = vmatprep.subr.mxu0 0.0
    %193 = vmatpush1.msra.mxu0 0.0
    %194 = vmatprep.subr.mxu0 0.0
    %195 = vmatpush1.msra.mxu0 0.0
    %196 = vmatprep.subr.mxu0 0.0
    %197 = vmatpush1.msra.mxu0 0.0
    %198 = vmatprep.subr.mxu0 0.0
    %199 = vmatpush1.msra.mxu0 0.0
    %200 = vmatprep.subr.mxu0 0.0
    %201 = vmatpush1.msra.mxu0 0.0
    %202 = vmatprep.subr.mxu0 0.0
    %203 = vmatpush1.msra.mxu0 0.0
    %204 = vmatprep.subr.mxu0 0.0
    %205 = vmatpush1.msra.mxu0 0.0
    %206 = vmatprep.subr.mxu0 0.0
    %207 = vmatpush1.msra.mxu0 0.0
    %208 = vmatprep.subr.mxu0 0.0
    %209 = vmatpush1.msra.mxu0 0.0
    %210 = vmatprep.subr.mxu0 0.0
    %211 = vmatpush1.msra.mxu0 0.0
    %212 = vmatprep.subr.mxu0 0.0
    %213 = vmatpush1.msra.mxu0 0.0
    %214 = vmatprep.subr.mxu0 0.0
    %215 = vmatpush1.msra.mxu0 0.0
    %216 = vmatprep.subr.mxu0 0.0
    %217 = vmatpush1.msra.mxu0 0.0
    %218 = vmatprep.subr.mxu0 0.0
    %219 = vmatpush1.msra.mxu0 0.0
    %220 = vmatprep.subr.mxu0 0.0
    %221 = vmatpush1.msra.mxu0 0.0
    %222 = vmatprep.subr.mxu0 0.0
    %223 = vmatpush1.msra.mxu0 0.0
    %224 = vmatprep.subr.mxu0 0.0
    %225 = vmatpush1.msra.mxu0 0.0
    %226 = vmatprep.subr.mxu0 0.0
    %227 = vmatpush1.msra.mxu0 0.0
    %228 = vmatprep.subr.mxu0 0.0
    %229 = vmatpush1.msra.mxu0 0.0
    %230 = vmatprep.subr.mxu0 0.0
    %231 = vmatpush1.msra.mxu0 0.0
    %232 = vmatprep.subr.mxu0 0.0
    %233 = vmatpush1.msra.mxu0 0.0
    %234 = vmatprep.subr.mxu0 0.0
    %235 = vmatpush1.msra.mxu0 0.0
    %236 = vmatprep.subr.mxu0 0.0
    %237 = vmatpush1.msra.mxu0 0.0
    %238 = vmatprep.mubr.f32.mxu0 0.0
    %239 = vmatmul.mubr.f32.gmra.mrb[0].mxu0 %v172
    %v240 = vpop.f32.mrb[0].mxu0
    %v241 = vadd.f32 0.0, %v240
    %v242 = vpop.f32.mrb[0].mxu0
    %243 = vdwg.mxu0
    %v244 = vsel %vm99, %v97, 0
    %246 = vmatprep.subr.mxu0 0.0
    %247 = vmatpush1.msra.mxu0 %v46
    %248 = vmatprep.subr.mxu0 0.0
    %249 = vmatpush1.msra.mxu0 0.0
    %250 = vmatprep.subr.mxu0 0.0
    %251 = vmatpush1.msra.mxu0 0.0
    %252 = vmatprep.subr.mxu0 0.0
    %253 = vmatpush1.msra.mxu0 0.0
    %254 = vmatprep.subr.mxu0 0.0
    %255 = vmatpush1.msra.mxu0 0.0
    %256 = vmatprep.subr.mxu0 0.0
    %257 = vmatpush1.msra.mxu0 0.0
    %258 = vmatprep.subr.mxu0 0.0
    %259 = vmatpush1.msra.mxu0 0.0
    %260 = vmatprep.subr.mxu0 0.0
    %261 = vmatpush1.msra.mxu0 0.0
    %262 = vmatprep.subr.mxu0 0.0
    %263 = vmatpush1.msra.mxu0 0.0
    %264 = vmatprep.subr.mxu0 0.0
    %265 = vmatpush1.msra.mxu0 0.0
    %266 = vmatprep.subr.mxu0 0.0
    %267 = vmatpush1.msra.mxu0 0.0
    %268 = vmatprep.subr.mxu0 0.0
    %269 = vmatpush1.msra.mxu0 0.0
    %270 = vmatprep.subr.mxu0 0.0
    %271 = vmatpush1.msra.mxu0 0.0
    %272 = vmatprep.subr.mxu0 0.0
    %273 = vmatpush1.msra.mxu0 0.0
    %274 = vmatprep.subr.mxu0 0.0
    %275 = vmatpush1.msra.mxu0 0.0
    %276 = vmatprep.subr.mxu0 0.0
    %277 = vmatpush1.msra.mxu0 0.0
    %278 = vmatprep.subr.mxu0 0.0
    %279 = vmatpush1.msra.mxu0 0.0
    %280 = vmatprep.subr.mxu0 0.0
    %281 = vmatpush1.msra.mxu0 0.0
    %282 = vmatprep.subr.mxu0 0.0
    %283 = vmatpush1.msra.mxu0 0.0
    %284 = vmatprep.subr.mxu0 0.0
    %285 = vmatpush1.msra.mxu0 0.0
    %286 = vmatprep.subr.mxu0 0.0
    %287 = vmatpush1.msra.mxu0 0.0
    %288 = vmatprep.subr.mxu0 0.0
    %289 = vmatpush1.msra.mxu0 0.0
    %290 = vmatprep.subr.mxu0 0.0
    %291 = vmatpush1.msra.mxu0 0.0
    %292 = vmatprep.subr.mxu0 0.0
    %293 = vmatpush1.msra.mxu0 0.0
    %294 = vmatprep.subr.mxu0 0.0
    %295 = vmatpush1.msra.mxu0 0.0
    %296 = vmatprep.subr.mxu0 0.0
    %297 = vmatpush1.msra.mxu0 0.0
    %298 = vmatprep.subr.mxu0 0.0
    %299 = vmatpush1.msra.mxu0 0.0
    %300 = vmatprep.subr.mxu0 0.0
    %301 = vmatpush1.msra.mxu0 0.0
    %302 = vmatprep.subr.mxu0 0.0
    %303 = vmatpush1.msra.mxu0 0.0
    %304 = vmatprep.subr.mxu0 0.0
    %305 = vmatpush1.msra.mxu0 0.0
    %306 = vmatprep.subr.mxu0 0.0
    %307 = vmatpush1.msra.mxu0 0.0
    %308 = vmatprep.subr.mxu0 0.0
    %309 = vmatpush1.msra.mxu0 0.0
    %310 = vmatprep.mubr.f32.mxu0 0.0
    %311 = vmatmul.mubr.f32.gmra.mrb[0].mxu0 %v244
    %v312 = vpop.f32.mrb[0].mxu0
    %v313 = vadd.f32 0.0, %v312
    %v314 = vpop.f32.mrb[0].mxu0
    %315 = vdwg.mxu0
    %v316 = vsel %vm99, %v98, 0
    %318 = vmatprep.subr.mxu0 0.0
    %319 = vmatpush1.msra.mxu0 %v47
    %320 = vmatprep.subr.mxu0 0.0
    %321 = vmatpush1.msra.mxu0 0.0
    %322 = vmatprep.subr.mxu0 0.0
    %323 = vmatpush1.msra.mxu0 0.0
    %324 = vmatprep.subr.mxu0 0.0
    %325 = vmatpush1.msra.mxu0 0.0
    %326 = vmatprep.subr.mxu0 0.0
    %327 = vmatpush1.msra.mxu0 0.0
    %328 = vmatprep.subr.mxu0 0.0
    %329 = vmatpush1.msra.mxu0 0.0
    %330 = vmatprep.subr.mxu0 0.0
    %331 = vmatpush1.msra.mxu0 0.0
    %332 = vmatprep.subr.mxu0 0.0
    %333 = vmatpush1.msra.mxu0 0.0
    %334 = vmatprep.subr.mxu0 0.0
    %335 = vmatpush1.msra.mxu0 0.0
    %336 = vmatprep.subr.mxu0 0.0
    %337 = vmatpush1.msra.mxu0 0.0
    %338 = vmatprep.subr.mxu0 0.0
    %339 = vmatpush1.msra.mxu0 0.0
    %340 = vmatprep.subr.mxu0 0.0
    %341 = vmatpush1.msra.mxu0 0.0
    %342 = vmatprep.subr.mxu0 0.0
    %343 = vmatpush1.msra.mxu0 0.0
    %344 = vmatprep.subr.mxu0 0.0
    %345 = vmatpush1.msra.mxu0 0.0
    %346 = vmatprep.subr.mxu0 0.0
    %347 = vmatpush1.msra.mxu0 0.0
    %348 = vmatprep.subr.mxu0 0.0
    %349 = vmatpush1.msra.mxu0 0.0
    %350 = vmatprep.subr.mxu0 0.0
    %351 = vmatpush1.msra.mxu0 0.0
    %352 = vmatprep.subr.mxu0 0.0
    %353 = vmatpush1.msra.mxu0 0.0
    %354 = vmatprep.subr.mxu0 0.0
    %355 = vmatpush1.msra.mxu0 0.0
    %356 = vmatprep.subr.mxu0 0.0
    %357 = vmatpush1.msra.mxu0 0.0
    %358 = vmatprep.subr.mxu0 0.0
    %359 = vmatpush1.msra.mxu0 0.0
    %360 = vmatprep.subr.mxu0 0.0
    %361 = vmatpush1.msra.mxu0 0.0
    %362 = vmatprep.subr.mxu0 0.0
    %363 = vmatpush1.msra.mxu0 0.0
    %364 = vmatprep.subr.mxu0 0.0
    %365 = vmatpush1.msra.mxu0 0.0
    %366 = vmatprep.subr.mxu0 0.0
    %367 = vmatpush1.msra.mxu0 0.0
    %368 = vmatprep.subr.mxu0 0.0
    %369 = vmatpush1.msra.mxu0 0.0
    %370 = vmatprep.subr.mxu0 0.0
    %371 = vmatpush1.msra.mxu0 0.0
    %372 = vmatprep.subr.mxu0 0.0
    %373 = vmatpush1.msra.mxu0 0.0
    %374 = vmatprep.subr.mxu0 0.0
    %375 = vmatpush1.msra.mxu0 0.0
    %376 = vmatprep.subr.mxu0 0.0
    %377 = vmatpush1.msra.mxu0 0.0
    %378 = vmatprep.subr.mxu0 0.0
    %379 = vmatpush1.msra.mxu0 0.0
    %380 = vmatprep.subr.mxu0 0.0
    %381 = vmatpush1.msra.mxu0 0.0
    %382 = vmatprep.mubr.f32.mxu0 0.0
    %383 = vmatmul.mubr.f32.gmra.mrb[0].mxu0 %v316
    %v384 = vpop.f32.mrb[0].mxu0
    %v385 = vadd.f32 0.0, %v384
    %v386 = vpop.f32.mrb[0].mxu0
    %387 = vdwg.mxu0
    %v388 = vsel %vm99, %v82, 0
    %390 = vmatprep.subr.mxu0 0.0
    %391 = vmatpush1.msra.mxu0 %v48
    %392 = vmatprep.subr.mxu0 0.0
    %393 = vmatpush1.msra.mxu0 0.0
    %394 = vmatprep.subr.mxu0 0.0
    %395 = vmatpush1.msra.mxu0 0.0
    %396 = vmatprep.subr.mxu0 0.0
    %397 = vmatpush1.msra.mxu0 0.0
    %398 = vmatprep.subr.mxu0 0.0
    %399 = vmatpush1.msra.mxu0 0.0
    %400 = vmatprep.subr.mxu0 0.0
    %401 = vmatpush1.msra.mxu0 0.0
    %402 = vmatprep.subr.mxu0 0.0
    %403 = vmatpush1.msra.mxu0 0.0
    %404 = vmatprep.subr.mxu0 0.0
    %405 = vmatpush1.msra.mxu0 0.0
    %406 = vmatprep.subr.mxu0 0.0
    %407 = vmatpush1.msra.mxu0 0.0
    %408 = vmatprep.subr.mxu0 0.0
    %409 = vmatpush1.msra.mxu0 0.0
    %410 = vmatprep.subr.mxu0 0.0
    %411 = vmatpush1.msra.mxu0 0.0
    %412 = vmatprep.subr.mxu0 0.0
    %413 = vmatpush1.msra.mxu0 0.0
    %414 = vmatprep.subr.mxu0 0.0
    %415 = vmatpush1.msra.mxu0 0.0
    %416 = vmatprep.subr.mxu0 0.0
    %417 = vmatpush1.msra.mxu0 0.0
    %418 = vmatprep.subr.mxu0 0.0
    %419 = vmatpush1.msra.mxu0 0.0
    %420 = vmatprep.subr.mxu0 0.0
    %421 = vmatpush1.msra.mxu0 0.0
    %422 = vmatprep.subr.mxu0 0.0
    %423 = vmatpush1.msra.mxu0 0.0
    %424 = vmatprep.subr.mxu0 0.0
    %425 = vmatpush1.msra.mxu0 0.0
    %426 = vmatprep.subr.mxu0 0.0
    %427 = vmatpush1.msra.mxu0 0.0
    %428 = vmatprep.subr.mxu0 0.0
    %429 = vmatpush1.msra.mxu0 0.0
    %430 = vmatprep.subr.mxu0 0.0
    %431 = vmatpush1.msra.mxu0 0.0
    %432 = vmatprep.subr.mxu0 0.0
    %433 = vmatpush1.msra.mxu0 0.0
    %434 = vmatprep.subr.mxu0 0.0
    %435 = vmatpush1.msra.mxu0 0.0
    %436 = vmatprep.subr.mxu0 0.0
    %437 = vmatpush1.msra.mxu0 0.0
    %438 = vmatprep.subr.mxu0 0.0
    %439 = vmatpush1.msra.mxu0 0.0
    %440 = vmatprep.subr.mxu0 0.0
    %441 = vmatpush1.msra.mxu0 0.0
    %442 = vmatprep.subr.mxu0 0.0
    %443 = vmatpush1.msra.mxu0 0.0
    %444 = vmatprep.subr.mxu0 0.0
    %445 = vmatpush1.msra.mxu0 0.0
    %446 = vmatprep.subr.mxu0 0.0
    %447 = vmatpush1.msra.mxu0 0.0
    %448 = vmatprep.subr.mxu0 0.0
    %449 = vmatpush1.msra.mxu0 0.0
    %450 = vmatprep.subr.mxu0 0.0
    %451 = vmatpush1.msra.mxu0 0.0
    %452 = vmatprep.subr.mxu0 0.0
    %453 = vmatpush1.msra.mxu0 0.0
    %454 = vmatprep.mubr.f32.mxu0 0.0
    %455 = vmatmul.mubr.f32.gmra.mrb[0].mxu0 %v388
    %v456 = vpop.f32.mrb[0].mxu0
    %v457 = vadd.f32 0.0, %v456
    %v458 = vpop.f32.mrb[0].mxu0
    %459 = vdwg.mxu0
    %v460 = vsel %vm99, %v96, 0
    %462 = vmatprep.subr.mxu0 0.0
    %463 = vmatpush1.msra.mxu0 %v49
    %464 = vmatprep.subr.mxu0 0.0
    %465 = vmatpush1.msra.mxu0 0.0
    %466 = vmatprep.subr.mxu0 0.0
    %467 = vmatpush1.msra.mxu0 0.0
    %468 = vmatprep.subr.mxu0 0.0
    %469 = vmatpush1.msra.mxu0 0.0
    %470 = vmatprep.subr.mxu0 0.0
    %471 = vmatpush1.msra.mxu0 0.0
    %472 = vmatprep.subr.mxu0 0.0
    %473 = vmatpush1.msra.mxu0 0.0
    %474 = vmatprep.subr.mxu0 0.0
    %475 = vmatpush1.msra.mxu0 0.0
    %476 = vmatprep.subr.mxu0 0.0
    %477 = vmatpush1.msra.mxu0 0.0
    %478 = vmatprep.subr.mxu0 0.0
    %479 = vmatpush1.msra.mxu0 0.0
    %480 = vmatprep.subr.mxu0 0.0
    %481 = vmatpush1.msra.mxu0 0.0
    %482 = vmatprep.subr.mxu0 0.0
    %483 = vmatpush1.msra.mxu0 0.0
    %484 = vmatprep.subr.mxu0 0.0
    %485 = vmatpush1.msra.mxu0 0.0
    %486 = vmatprep.subr.mxu0 0.0
    %487 = vmatpush1.msra.mxu0 0.0
    %488 = vmatprep.subr.mxu0 0.0
    %489 = vmatpush1.msra.mxu0 0.0
    %490 = vmatprep.subr.mxu0 0.0
    %491 = vmatpush1.msra.mxu0 0.0
    %492 = vmatprep.subr.mxu0 0.0
    %493 = vmatpush1.msra.mxu0 0.0
    %494 = vmatprep.subr.mxu0 0.0
    %495 = vmatpush1.msra.mxu0 0.0
    %496 = vmatprep.subr.mxu0 0.0
    %497 = vmatpush1.msra.mxu0 0.0
    %498 = vmatprep.subr.mxu0 0.0
    %499 = vmatpush1.msra.mxu0 0.0
    %500 = vmatprep.subr.mxu0 0.0
    %501 = vmatpush1.msra.mxu0 0.0
    %502 = vmatprep.subr.mxu0 0.0
    %503 = vmatpush1.msra.mxu0 0.0
    %504 = vmatprep.subr.mxu0 0.0
    %505 = vmatpush1.msra.mxu0 0.0
    %506 = vmatprep.subr.mxu0 0.0
    %507 = vmatpush1.msra.mxu0 0.0
    %508 = vmatprep.subr.mxu0 0.0
    %509 = vmatpush1.msra.mxu0 0.0
    %510 = vmatprep.subr.mxu0 0.0
    %511 = vmatpush1.msra.mxu0 0.0
    %512 = vmatprep.subr.mxu0 0.0
    %513 = vmatpush1.msra.mxu0 0.0
    %514 = vmatprep.subr.mxu0 0.0
    %515 = vmatpush1.msra.mxu0 0.0
    %516 = vmatprep.subr.mxu0 0.0
    %517 = vmatpush1.msra.mxu0 0.0
    %518 = vmatprep.subr.mxu0 0.0
    %519 = vmatpush1.msra.mxu0 0.0
    %520 = vmatprep.subr.mxu0 0.0
    %521 = vmatpush1.msra.mxu0 0.0
    %522 = vmatprep.subr.mxu0 0.0
    %523 = vmatpush1.msra.mxu0 0.0
    %524 = vmatprep.subr.mxu0 0.0
    %525 = vmatpush1.msra.mxu0 0.0
    %526 = vmatprep.mubr.f32.mxu0 0.0
    %527 = vmatmul.mubr.f32.gmra.mrb[0].mxu0 %v460
    %v528 = vpop.f32.mrb[0].mxu0
    %v529 = vadd.f32 0.0, %v528
    %v530 = vpop.f32.mrb[0].mxu0
    %531 = vdwg.mxu0
    %v532 = vmul.f32 %v169, %v169
    %v533 = vmul.f32 %v241, %v241
    %v534 = vmul.f32 %v313, %v313
    %v535 = vmul.f32 %v385, %v385
    %v536 = vmul.f32 %v457, %v457
    %v537 = vmul.f32 %v529, %v529
    %v544 = vrot.slane %v533, 7
    %vm545 = vcmask 1041409
    %v546 = vsel %vm545, %v544, %v532
    %v547 = vrot.slane %v534, 6
    %vm548 = vcmask 1042434
    %v549 = vsel %vm548, %v547, %v546
    %v550 = vrot.slane %v535, 5
    %vm551 = vcmask 1043459
    %v552 = vsel %vm551, %v550, %v549
    %v553 = vrot.slane %v536, 4
    %vm554 = vcmask 1044484
    %v555 = vsel %vm554, %v553, %v552
    %v556 = vrot.slane %v537, 3
    %vm557 = vcmask 1045509
    %v558 = vsel %vm557, %v556, %v555
    %vm560 = vcmask 259072
    %v561 = vsel %vm560, %v558, 0.0
    %562 = vadd.xlane.f32.xlu0 %v561
    %v563 = vpop.xlane.xlu0 %562
    %v564 = vmax.f32 %v563, 1e-16
    %v565 = vrsqrt.pop %v564
    %v567 = vrot.slane %v565, 1
    %v568 = vrot.slane %v565, 2
    %v569 = vrot.slane %v565, 3
    %v570 = vrot.slane %v565, 4
    %v571 = vrot.slane %v565, 5
    %v578 = vmul.f32 %v169, %v565
    %v579 = vmul.f32 %v241, %v567
    %v580 = vmul.f32 %v313, %v568
    %v581 = vmul.f32 %v385, %v569
    %v582 = vmul.f32 %v457, %v570
    %v583 = vmul.f32 %v529, %v571
    %s584 = smul.u32 0, 6
    %v591 = vrot.slane %v579, 7
    %v592 = vsel %vm545, %v591, %v578
    %v593 = vrot.slane %v580, 6
    %v594 = vsel %vm548, %v593, %v592
    %v595 = vrot.slane %v581, 5
    %v596 = vsel %vm551, %v595, %v594
    %v597 = vrot.slane %v582, 4
    %v598 = vsel %vm554, %v597, %v596
    %v599 = vrot.slane %v583, 3
    %v600 = vsel %vm557, %v599, %v598
    %s602 = scalar_lea.vmem [#allocation2], %s584
    %603 = vst.msk [vmem:[%s602] sm:$0x3f] %vm560, %v600
    %p604 = scmp.eq.s32.totalorder 0, 0
    // Predicated region
    $region26: #{tpu_custom_call.1} parent=1 // pred_check
      %p605 = pneg %p604
    $region27: #{tpu_custom_call.1} parent=1 // pred_check_branch
      %607 = sbr.rel (%p605) target = $region29
    $region28: #{tpu_custom_call.1} parent=1 // pred_region
      %v608 = vld [vmem:[#allocation2] sm:$0x3]
      %v609 = vld [vmem:[#allocation2 + $0x2] sm:$0xf]
      %vm610 = vcmask 261120
      %v612 = vsel %vm610, %v608, 0
      %v615 = vsel %vm610, %v609, 0
      %617 = vmatprep.subr.mxu0 0.0
      %618 = vmatpush1.xpose.msra.mxu0 %v615
      %619 = vmatprep.subr.mxu0 0.0
      %620 = vmatpush1.xpose.msra.mxu0 0.0
      %621 = vmatprep.subr.mxu0 0.0
      %622 = vmatpush1.xpose.msra.mxu0 0.0
      %623 = vmatprep.subr.mxu0 0.0
      %624 = vmatpush1.xpose.msra.mxu0 0.0
      %625 = vmatprep.subr.mxu0 0.0
      %626 = vmatpush1.xpose.msra.mxu0 0.0
      %627 = vmatprep.subr.mxu0 0.0
      %628 = vmatpush1.xpose.msra.mxu0 0.0
      %629 = vmatprep.subr.mxu0 0.0
      %630 = vmatpush1.xpose.msra.mxu0 0.0
      %631 = vmatprep.subr.mxu0 0.0
      %632 = vmatpush1.xpose.msra.mxu0 0.0
      %633 = vmatprep.subr.mxu0 0.0
      %634 = vmatpush1.xpose.msra.mxu0 0.0
      %635 = vmatprep.subr.mxu0 0.0
      %636 = vmatpush1.xpose.msra.mxu0 0.0
      %637 = vmatprep.subr.mxu0 0.0
      %638 = vmatpush1.xpose.msra.mxu0 0.0
      %639 = vmatprep.subr.mxu0 0.0
      %640 = vmatpush1.xpose.msra.mxu0 0.0
      %641 = vmatprep.subr.mxu0 0.0
      %642 = vmatpush1.xpose.msra.mxu0 0.0
      %643 = vmatprep.subr.mxu0 0.0
      %644 = vmatpush1.xpose.msra.mxu0 0.0
      %645 = vmatprep.subr.mxu0 0.0
      %646 = vmatpush1.xpose.msra.mxu0 0.0
      %647 = vmatprep.subr.mxu0 0.0
      %648 = vmatpush1.xpose.msra.mxu0 0.0
      %649 = vmatprep.subr.mxu0 0.0
      %650 = vmatpush1.xpose.msra.mxu0 0.0
      %651 = vmatprep.subr.mxu0 0.0
      %652 = vmatpush1.xpose.msra.mxu0 0.0
      %653 = vmatprep.subr.mxu0 0.0
      %654 = vmatpush1.xpose.msra.mxu0 0.0
      %655 = vmatprep.subr.mxu0 0.0
      %656 = vmatpush1.xpose.msra.mxu0 0.0
      %657 = vmatprep.subr.mxu0 0.0
      %658 = vmatpush1.xpose.msra.mxu0 0.0
      %659 = vmatprep.subr.mxu0 0.0
      %660 = vmatpush1.xpose.msra.mxu0 0.0
      %661 = vmatprep.subr.mxu0 0.0
      %662 = vmatpush1.xpose.msra.mxu0 0.0
      %663 = vmatprep.subr.mxu0 0.0
      %664 = vmatpush1.xpose.msra.mxu0 0.0
      %665 = vmatprep.subr.mxu0 0.0
      %666 = vmatpush1.xpose.msra.mxu0 0.0
      %667 = vmatprep.subr.mxu0 0.0
      %668 = vmatpush1.xpose.msra.mxu0 0.0
      %669 = vmatprep.subr.mxu0 0.0
      %670 = vmatpush1.xpose.msra.mxu0 0.0
      %671 = vmatprep.subr.mxu0 0.0
      %672 = vmatpush1.xpose.msra.mxu0 0.0
      %673 = vmatprep.subr.mxu0 0.0
      %674 = vmatpush1.xpose.msra.mxu0 0.0
      %675 = vmatprep.subr.mxu0 0.0
      %676 = vmatpush1.xpose.msra.mxu0 0.0
      %677 = vmatprep.subr.mxu0 0.0
      %678 = vmatpush1.xpose.msra.mxu0 0.0
      %679 = vmatprep.subr.mxu0 0.0
      %680 = vmatpush1.xpose.msra.mxu0 0.0
      %681 = vmatprep.mubr.f32.mxu0 0.0
      %682 = vmatmul.mubr.f32.gmra.mrb[0].mxu0 %v612
      %v683 = vpop.f32.mrb[0].mxu0
      %v684 = vadd.f32 0.0, %v683
      %v685 = vpop.f32.mrb[0].mxu0
      %686 = vdwg.mxu0
      %v687 = vmax.f32 %v684, 0.0
      %v688 = vmul.f32 %v687, 0.5
      %v689 = vld [vmem:[%s2] sm:$0x3]
      %v690 = vmul.f32 %v689, 0.5
      %v691 = vadd.f32 %v688, %v690
      %vm692 = vcmask 25600
      %v693 = vsel %vm692, %v691, -inf
      %694 = vmax.xlane.f32.xlu0 %v693
      %v695 = vpop.xlane.xlu0 %694
      %v696 = vlaneseq
      %v697 = vand.u32 %v696, 127
      %vm698 = vcmp.ge.f32.partialorder %v691, %v695
      %v699 = vsel %vm698, %v697, 4
      %v700 = vsel %vm692, %v699, 2147483647
      %v701 = vand.u32 %v700, 65535
      %v702 = vshra.s32 %v700, 16
      %v703 = vcvt.s32.f32 %v701
      %v704 = vcvt.s32.f32 %v702
      %705 = vmin.xlane.f32.xlu0 %v704
      %v706 = vpop.xlane.xlu0 %705
      %vm707 = vcmp.eq.f32.partialorder %v704, %v706
      %v708 = vsel %vm707, %v703, inf
      %709 = vmin.xlane.f32.xlu0 %v708
      %v710 = vpop.xlane.xlu0 %709
      %v711 = vcvt.f32.s32 %v710
      %v712 = vcvt.f32.s32 %v706
      %v713 = vshll.u32 %v712, 16
      %v714 = vadd.s32 %v713, %v711
      %v715 = vld [vmem:[%s3] sm:$0x1]
      %v717 = vlaneseq
      %v718 = vshrl.u32 %v717, 7
      %v719 = vsub.s32 0, %v718
      %v720 = vrot.slane %v715, %v719
      %vm722 = vcmp.eq.s32.totalorder %v697, %v714
      %v723 = vsel %vm722, %v720, 0.0
      %v724 = vsel %vm692, %v723, 0.0
      %725 = vadd.xlane.f32.xlu0 %v724
      %v726 = vpop.xlane.xlu0 %725
      %v727 = vmul.f32 %v695, %v726
      %728 = vst [vmem:[#allocation8] sm:$0x3] %v727
    $region29: #{tpu_custom_call.1} parent=1 // pred_fallthru
      _
    // Predicated region
    $region30: #{tpu_custom_call.1} parent=1 // pred_check
      _
    $region31: #{tpu_custom_call.1} parent=1 // pred_check_branch
      %730 = sbr.rel (0) target = $region33
    $region32: #{tpu_custom_call.1} parent=1 // pred_region
      %s732 = ssub.s32 32, 32
      %733 = vsyncadd [#allocation5], %s732
      %s735 = sshll.u32 [#allocation8], 4
      %s736 = int_to_ptr.vmem [resolvable:$true] %s735
      %738 = dma.vmem_to_hbm [thread:$0]  %s736, 32, %s4, [#allocation5]
    $region33: #{tpu_custom_call.1} parent=1 // pred_fallthru
      _
    // Predicated region
    $region34: #{tpu_custom_call.1} parent=1 // pred_check
      _
    $region35: #{tpu_custom_call.1} parent=1 // pred_check_branch
      %740 = sbr.rel (0) target = $region37
    $region36: #{tpu_custom_call.1} parent=1 // pred_region
      %741 = dma.done [#allocation5], 32
    $region37: #{tpu_custom_call.1} parent=1 // pred_fallthru
      _
    %742 = vsyncpa [#allocation4], 1
    %743 = vsyncpa [#allocation7], 1
    %744 = vsyncpa [#allocation5], 1

</llo_original>
